<compile_context>
chip_gen: v7x
topology: tpu7x:2x2x1
jax: 0.10.0
libtpu: 0.0.40
codegen_flags: <defaults>
</compile_context>

<pallas_src>
from collections import OrderedDict

import numpy as np
import jax
import jax.numpy as jnp
from jax.experimental import pallas as pl
from jax.experimental.pallas import tpu as pltpu


# ----------------------------- helpers ------------------------------------- #
def _round_up(x, m):
    return ((x + m - 1) // m) * m


# Conservative (f32) double-buffered VMEM bytes per row of N, per 128-lane group:
#   loc:  2 tensors * (4->8 sublane-padded) * 4 B * 2 buf = 128 * A
#   cls:  2 tensors * 4 B * 2 buf                         =  16 * A
#   out:  cls_loss (bf16) + negvals (f32), 2 buf          = ~12 * A
_BYTES_PER_ROW_PER_LANE = 160
_VMEM_TILE_BUDGET = 16 * 1024 * 1024          # double-buffered working-set budget
_VMEM_LIMIT_BYTES = 32 * 1024 * 1024          # explicit limit; safe on v5e/v6e/v7x

# arrays at or below this many elements use exact lax.top_k for mining;
# larger ones switch to the near-linear TPU approx_max_k partial reduction.
_EXACT_TOPK_MAX_SIZE = 128 * 1024


def _choose_tile_n(n_rows, num_anchors):
    a_pad = _round_up(max(num_anchors, 1), 128)
    per_row = _BYTES_PER_ROW_PER_LANE * a_pad
    budget_tile = max(8, (_VMEM_TILE_BUDGET // per_row) // 8 * 8)
    # keep >= 4 row tiles so the "parallel" grid axis can shard across both
    # v7x TensorCores (harmless on v5e/v6e; per-step overhead stays amortized)
    target_tile = _round_up(max(-(-n_rows // 4), 1), 8)
    return max(8, min(budget_tile, target_tile))


# ----------------------------- Pallas kernel ------------------------------- #
def _make_loss_kernel(margin, margin_pos, tile_n, n_rows):
    margin = float(margin)
    margin_pos = float(margin_pos)

    def kernel(loc_p_ref, loc_t_ref, cls_p_ref, cls_t_ref,
               cls_loss_ref, negvals_ref, sums_ref):
        # classification tile [tile_n, A] (upcast inside the kernel; inputs may be bf16)
        cls_t = cls_t_ref[...].astype(jnp.float32)
        cls_p = cls_p_ref[...].astype(jnp.float32)

        # validity mask for the ragged last row tile (no wrapper-side padding).
        # everything feeding the reductions is where-masked on `valid`
        # (a mask-multiply would not kill NaNs coming from garbage OOB reads).
        row = jax.lax.broadcasted_iota(jnp.int32, cls_t.shape, 0)
        valid = (pl.program_id(0) * tile_n + row) < n_rows

        pos_raw = cls_t > 0.0
        ignored = cls_t == -1.0
        pos = jnp.logical_and(valid, pos_raw)
        neg = jnp.logical_and(valid,
                              jnp.logical_not(jnp.logical_or(pos_raw, ignored)))

        # ---- smooth-L1 localization loss: the loc block is [tile_n, 4, A]; each
        #      coord is a static sublane slice -> 4 accumulating VALU adds ----
        loc_pe = jnp.zeros(cls_t.shape, jnp.float32)
        for c in range(4):
            d = (loc_p_ref[:, c, :].astype(jnp.float32)
                 - loc_t_ref[:, c, :].astype(jnp.float32))
            ad = jnp.abs(d)
            loc_pe = loc_pe + jnp.where(ad < 1.0, 0.5 * d * d, ad - 0.5)
        loc_pe = jnp.where(pos, loc_pe, 0.0)   # masked_select_or_fill_constant(.., pos, 0)

        # ---- contrastive classification loss ----
        loss_neg = jnp.where(neg, jnp.maximum(cls_p - margin, 0.0) * 0.5, 0.0)
        loss_pos = jnp.where(pos, jnp.maximum(margin_pos - cls_p, 0.0) * 0.5, 0.0)
        loss_neg = loss_neg * loss_neg
        loss_pos = loss_pos * loss_pos
        cls_loss = loss_neg + loss_pos

        # only two lane-dense [tile_n, A] slabs are written back
        cls_loss_ref[...] = cls_loss.astype(cls_loss_ref.dtype)   # logging-only, may be bf16
        negvals_ref[...] = jnp.where(neg, cls_loss, -1.0)         # for hard-neg mining

        # ---- per-tile partial reductions (lanes 0..2 of a (1, 8, 128) slab);
        #      XLU work is free filler while the kernel is DMA-bound ----
        s_npos = jnp.sum(pos.astype(jnp.float32))    # num_pos
        s_loc = jnp.sum(loc_pe)                      # loc loss (unnormalized)
        s_clsp = jnp.sum(loss_pos)                   # cls_loss[pos].sum()
        lane = jax.lax.broadcasted_iota(jnp.int32, sums_ref.shape, 2)
        sums_ref[...] = ((lane == 0).astype(jnp.float32) * s_npos
                         + (lane == 1).astype(jnp.float32) * s_loc
                         + (lane == 2).astype(jnp.float32) * s_clsp)

    return kernel


def _run_loss_kernel(loc_p, loc_t, cls_p, cls_t, margin, margin_pos, tile_n,
                     per_element_dtype):
    N, _, A = loc_p.shape                     # natural layout: (N, 4, A)
    num_tiles = -(-N // tile_n)               # ragged last tile handled in-kernel
    kernel = _make_loss_kernel(margin, margin_pos, tile_n, N)
    return pl.pallas_call(
        kernel,
        grid=(num_tiles,),
        out_shape=(
            jax.ShapeDtypeStruct((N, A), per_element_dtype),          # cls loss per element
            jax.ShapeDtypeStruct((N, A), jnp.float32),                # neg-masked loss
            jax.ShapeDtypeStruct((num_tiles, 8, 128), jnp.float32),   # per-tile partial sums
        ),
        in_specs=[
            pl.BlockSpec((tile_n, 4, A), lambda i: (i, 0, 0)),
            pl.BlockSpec((tile_n, 4, A), lambda i: (i, 0, 0)),
            pl.BlockSpec((tile_n, A), lambda i: (i, 0)),
            pl.BlockSpec((tile_n, A), lambda i: (i, 0)),
        ],
        out_specs=(
            pl.BlockSpec((tile_n, A), lambda i: (i, 0)),
            pl.BlockSpec((tile_n, A), lambda i: (i, 0)),
            pl.BlockSpec((1, 8, 128), lambda i: (i, 0, 0)),
        ),
        compiler_params=pltpu.CompilerParams(
            dimension_semantics=("parallel",),
            vmem_limit_bytes=_VMEM_LIMIT_BYTES,
        ),
    )(loc_p, loc_t, cls_p, cls_t)


# ------------------------------ module wrapper ------------------------------ #
class Os2dObjectivePallas:
    """JAX/Pallas port of Os2dObjective (ContrastiveLoss branch, no target remapping,
    cls_preds_for_neg=None, patch_mining_mode=False)."""

    def __init__(self, class_loss="ContrastiveLoss", margin=0.5, margin_pos=0.6,
                 class_loss_neg_weight=0.2, remap_classification_targets=False,
                 localization_weight=0.2, neg_to_pos_ratio=3, rll_neg_weight_ratio=0.001,
                 max_hard_negatives=16384, exact_hard_negative_mining=False,
                 per_element_loss_dtype=jnp.bfloat16):
        # TODO(synk): RLL class-loss branch, target remapping, cls_preds_for_neg and
        # patch_mining_mode are not implemented.
        assert class_loss == "ContrastiveLoss"
        assert not remap_classification_targets
        self.class_loss = class_loss
        self.margin = margin
        self.margin_pos = margin_pos
        self.class_loss_neg_weight = class_loss_neg_weight
        self.localization_weight = localization_weight
        self.neg_to_pos_ratio = neg_to_pos_ratio
        # static cap for the bounded top-k used in hard-negative mining
        # (must satisfy neg_to_pos_ratio * num_pos <= max_hard_negatives)
        self.max_hard_negatives = max_hard_negatives
        self.exact_hard_negative_mining = exact_hard_negative_mining
        self.per_element_loss_dtype = per_element_loss_dtype

    def __call__(self, loc_preds, loc_targets, cls_preds, cls_targets):
        """loc_*: [B, L, 4, A], cls_*: [B, L, A]  (PyTorch axis convention)."""
        B, L, four, A = loc_preds.shape
        assert four == 4
        N = B * L

        # free, contiguous reshapes only — no transpose / pad HBM rewrites,
        # and no forced dtype casts (bf16 inputs are upcast inside the kernel).
        loc_p = loc_preds.reshape(N, 4, A)
        loc_t = loc_targets.reshape(N, 4, A)
        cls_p = cls_preds.reshape(N, A)
        cls_t = cls_targets.reshape(N, A)

        tile_n = _choose_tile_n(N, A)
        cls_loss_pe, neg_vals, partials = _run_loss_kernel(
            loc_p, loc_t, cls_p, cls_t, self.margin, self.margin_pos, tile_n,
            self.per_element_loss_dtype)

        sums = jnp.sum(partials[:, 0, 0:3], axis=0)
        num_pos = sums[0]
        loc_loss_sum = sums[1]
        cls_loss_pos_sum = sums[2]

        # ---- hard negative mining: bounded top-k over the neg-masked losses ----
        # TODO(synk): if neg_to_pos_ratio*num_pos ever exceeds max_hard_negatives the
        # top-k truncates; the reference's exact global rank/sort has no cheap analogue.
        flat_negvals = neg_vals.reshape(-1)
        total = int(flat_negvals.shape[0])
        k_cap = int(min(total, self.max_hard_negatives))
        if self.exact_hard_negative_mining or total <= _EXACT_TOPK_MAX_SIZE:
            top_vals = jax.lax.top_k(flat_negvals, k_cap)[0]
        else:
            # TODO(synk): approx_max_k is a near-linear TPU partial reduction with
            # recall ~0.99 vs the reference's exact global sort (set
            # exact_hard_negative_mining=True to force the exact path).
            top_vals = jax.lax.approx_max_k(flat_negvals, k_cap, recall_target=0.99)[0]
        rank = jnp.arange(k_cap, dtype=jnp.float32)
        k_dyn = jnp.floor(self.neg_to_pos_ratio * num_pos)
        cls_loss_neg_sum = jnp.sum(
            jnp.where(rank < k_dyn, jnp.maximum(top_vals, 0.0), 0.0))

        # ---- normalization (num_pos clamped to 1, as in the reference) ----
        num_pos_c = jnp.maximum(num_pos, 1.0)
        num_pos_reg_c = num_pos_c  # pos_for_regression == pos (no remapping)

        loc_loss = loc_loss_sum / num_pos_reg_c
        cls_loss_pos = cls_loss_pos_sum / num_pos_c
        cls_loss_neg = cls_loss_neg_sum / num_pos_c
        cls_loss = cls_loss_pos + cls_loss_neg * self.class_loss_neg_weight
        loss = cls_loss + loc_loss * self.localization_weight

        suffix = "_hardneg{0}".format(self.neg_to_pos_ratio)
        losses = OrderedDict()
        losses["loss"] = loss
        losses["class_loss_per_element_detached_cpu"] = cls_loss_pe.reshape(B, L, A)
        losses["loc_smoothL1"] = loc_loss
        losses["cls_ContrastiveLoss" + suffix] = cls_loss
        losses["cls_ContrastiveLoss_pos"] = cls_loss_pos
        losses["cls_ContrastiveLoss_neg" + suffix] = cls_loss_neg
        return losses


# ------------------------------ numpy reference ----------------------------- #
def _reference_numpy(loc_p, loc_t, cls_p, cls_t, margin, margin_pos,
                     neg_to_pos_ratio, class_loss_neg_weight, localization_weight):
    # loc_*: [N, 4, A], cls_*: [N, A]
    pos = cls_t > 0
    ignored = cls_t == -1
    neg = ~(ignored | pos)
    num_pos = int(pos.sum())

    d = loc_p - loc_t
    ad = np.abs(d)
    sl1 = np.where(ad < 1.0, 0.5 * d * d, ad - 0.5).sum(axis=1)   # [N, A]
    loc_pe = np.where(pos, sl1, 0.0)
    loc_loss = loc_pe.sum()

    ln = np.where(neg, np.maximum(cls_p - margin, 0.0) * 0.5, 0.0) ** 2
    lp = np.where(pos, np.maximum(margin_pos - cls_p, 0.0) * 0.5, 0.0) ** 2
    cls_loss = ln + lp

    flat = cls_loss.reshape(-1)
    negf = neg.reshape(-1)
    vals = np.where(negf, flat, -1.0)
    order = np.argsort(-vals, kind="stable")
    k = int(neg_to_pos_ratio * num_pos)
    sel = order[:k]
    sel = sel[negf[sel]]
    cls_loss_neg = flat[sel].sum()
    cls_loss_pos = cls_loss[pos].sum()

    npos = max(num_pos, 1)
    loc_loss = loc_loss / npos
    cls_loss_pos = cls_loss_pos / npos
    cls_loss_neg = cls_loss_neg / npos
    cls_total = cls_loss_pos + cls_loss_neg * class_loss_neg_weight
    return cls_total + loc_loss * localization_weight


# ---------------------------------- main ------------------------------------ #
if __name__ == "__main__":
    objective = Os2dObjectivePallas(
        class_loss="ContrastiveLoss", margin=0.5, margin_pos=0.6,
        class_loss_neg_weight=0.2, remap_classification_targets=False,
        localization_weight=0.2, neg_to_pos_ratio=3, rll_neg_weight_ratio=0.001)

    base_key = jax.random.PRNGKey(0)

    def run_case(case_idx, B, L, A, dtype, tol):
        key = jax.random.fold_in(base_key, case_idx)
        k1, k2, k3, k4 = jax.random.split(key, 4)
        loc_preds = jax.random.normal(k1, (B, L, 4, A), dtype=jnp.float32).astype(dtype)
        loc_targets = jax.random.normal(k2, (B, L, 4, A), dtype=jnp.float32).astype(dtype)
        cls_preds = jax.random.uniform(k3, (B, L, A), dtype=jnp.float32,
                                       minval=-1.0, maxval=1.0).astype(dtype)
        # targets: 1 (positive), 0 (negative), -1 (ignore)
        r = jax.random.uniform(k4, (B, L, A), dtype=jnp.float32)
        cls_targets = jnp.where(r < 0.10, 1.0,
                                jnp.where(r < 0.20, -1.0, 0.0)).astype(dtype)

        losses = objective(loc_preds, loc_targets, cls_preds, cls_targets)
        jax.block_until_ready(losses["loss"])

        ref = _reference_numpy(
            np.asarray(loc_preds).astype(np.float32).reshape(B * L, 4, A),
            np.asarray(loc_targets).astype(np.float32).reshape(B * L, 4, A),
            np.asarray(cls_preds).astype(np.float32).reshape(B * L, A),
            np.asarray(cls_targets).astype(np.float32).reshape(B * L, A),
            margin=0.5, margin_pos=0.6, neg_to_pos_ratio=3,
            class_loss_neg_weight=0.2, localization_weight=0.2)
        got = float(losses["loss"])
        assert abs(got - ref) <= tol * max(1.0, abs(ref)), (B, L, A, str(dtype), got, ref)

    # aligned shapes, f32 inputs
    run_case(0, B=2, L=4, A=128, dtype=jnp.float32, tol=1e-4)
    # ragged row count -> exercises the in-kernel tail masking (no wrapper padding)
    run_case(1, B=2, L=5, A=128, dtype=jnp.float32, tol=1e-4)
    # bf16 inputs (kernel upcasts per tile) -> halves HBM read traffic
    run_case(2, B=2, L=4, A=128, dtype=jnp.bfloat16, tol=5e-3)

    print("KERNEL_OK")
</pallas_src>

<mosaic_0001>
module attributes {stable_mosaic.version = 11 : i64} {
  func.func @kernel(%arg0: i32, %arg1: memref<8x4x128xf32, #tpu.memory_space<vmem>>, %arg2: memref<8x4x128xf32, #tpu.memory_space<vmem>>, %arg3: memref<8x128xf32, #tpu.memory_space<vmem>>, %arg4: memref<8x128xf32, #tpu.memory_space<vmem>>, %arg5: memref<8x128xbf16, #tpu.memory_space<vmem>>, %arg6: memref<8x128xf32, #tpu.memory_space<vmem>>, %arg7: memref<1x8x128xf32, #tpu.memory_space<vmem>>) attributes {dimension_semantics = [#tpu.dimension_semantics<parallel>], iteration_bounds = array<i64: 1>, scalar_prefetch = 0 : i64, scratch_operands = 0 : i64, tpu.core_type = #tpu.core_type<tc>, window_params = [{transform_indices = @transform_0, window_bounds = array<i64: 8, 4, 128>}, {transform_indices = @transform_1, window_bounds = array<i64: 8, 4, 128>}, {transform_indices = @transform_2, window_bounds = array<i64: 8, 128>}, {transform_indices = @transform_3, window_bounds = array<i64: 8, 128>}, {transform_indices = @transform_4, window_bounds = array<i64: 8, 128>}, {transform_indices = @transform_5, window_bounds = array<i64: 8, 128>}, {transform_indices = @transform_6, window_bounds = array<i64: 1, 8, 128>}]} {
    %c0 = arith.constant 0 : index
    %c0_0 = arith.constant 0 : index
    %0 = vector.load %arg4[%c0, %c0_0] : memref<8x128xf32, #tpu.memory_space<vmem>>, vector<8x128xf32>
    %c0_1 = arith.constant 0 : index
    %c0_2 = arith.constant 0 : index
    %1 = vector.load %arg3[%c0_1, %c0_2] : memref<8x128xf32, #tpu.memory_space<vmem>>, vector<8x128xf32>
    %2 = tpu.iota {dimensions = array<i32: 0>} : vector<8x128xi32>
    %c8_i32 = arith.constant 8 : i32
    %3 = arith.muli %arg0, %c8_i32 : i32
    %4 = vector.broadcast %3 : i32 to vector<8x128xi32>
    %5 = arith.addi %4, %2 : vector<8x128xi32>
    %c8_i32_3 = arith.constant 8 : i32
    %6 = vector.broadcast %c8_i32_3 : i32 to vector<8x128xi32>
    %7 = arith.cmpi slt, %5, %6 : vector<8x128xi32>
    %cst = arith.constant 0.000000e+00 : f32
    %8 = vector.broadcast %cst : f32 to vector<8x128xf32>
    %9 = arith.cmpf ogt, %0, %8 : vector<8x128xf32>
    %cst_4 = arith.constant -1.000000e+00 : f32
    %10 = vector.broadcast %cst_4 : f32 to vector<8x128xf32>
    %11 = arith.cmpf oeq, %0, %10 : vector<8x128xf32>
    %12 = arith.andi %7, %9 : vector<8x128xi1>
    %13 = arith.ori %9, %11 : vector<8x128xi1>
    %cst_5 = arith.constant dense<true> : vector<8x128xi1>
    %14 = arith.xori %13, %cst_5 : vector<8x128xi1>
    %15 = arith.andi %7, %14 : vector<8x128xi1>
    %cst_6 = arith.constant 0.000000e+00 : f32
    %16 = vector.broadcast %cst_6 : f32 to vector<8x128xf32>
    %c0_7 = arith.constant 0 : index
    %c0_8 = arith.constant 0 : index
    %c0_9 = arith.constant 0 : index
    %17 = vector.load %arg1[%c0_7, %c0_8, %c0_9] : memref<8x4x128xf32, #tpu.memory_space<vmem>>, vector<8x1x128xf32>
    %18 = vector.shape_cast %17 : vector<8x1x128xf32> to vector<8x128xf32>
    %c0_10 = arith.constant 0 : index
    %c0_11 = arith.constant 0 : index
    %c0_12 = arith.constant 0 : index
    %19 = vector.load %arg2[%c0_10, %c0_11, %c0_12] : memref<8x4x128xf32, #tpu.memory_space<vmem>>, vector<8x1x128xf32>
    %20 = vector.shape_cast %19 : vector<8x1x128xf32> to vector<8x128xf32>
    %21 = arith.subf %18, %20 : vector<8x128xf32>
    %22 = math.absf %21 : vector<8x128xf32>
    %cst_13 = arith.constant 1.000000e+00 : f32
    %23 = vector.broadcast %cst_13 : f32 to vector<8x128xf32>
    %24 = arith.cmpf olt, %22, %23 : vector<8x128xf32>
    %cst_14 = arith.constant 5.000000e-01 : f32
    %25 = vector.broadcast %cst_14 : f32 to vector<8x128xf32>
    %26 = arith.mulf %25, %21 : vector<8x128xf32>
    %27 = arith.mulf %26, %21 : vector<8x128xf32>
    %cst_15 = arith.constant 5.000000e-01 : f32
    %28 = vector.broadcast %cst_15 : f32 to vector<8x128xf32>
    %29 = arith.subf %22, %28 : vector<8x128xf32>
    %30 = arith.select %24, %27, %29 : vector<8x128xi1>, vector<8x128xf32>
    %31 = arith.addf %16, %30 : vector<8x128xf32>
    %c0_16 = arith.constant 0 : index
    %c1 = arith.constant 1 : index
    %c0_17 = arith.constant 0 : index
    %32 = vector.load %arg1[%c0_16, %c1, %c0_17] : memref<8x4x128xf32, #tpu.memory_space<vmem>>, vector<8x1x128xf32>
    %33 = vector.shape_cast %32 : vector<8x1x128xf32> to vector<8x128xf32>
    %c0_18 = arith.constant 0 : index
    %c1_19 = arith.constant 1 : index
    %c0_20 = arith.constant 0 : index
    %34 = vector.load %arg2[%c0_18, %c1_19, %c0_20] : memref<8x4x128xf32, #tpu.memory_space<vmem>>, vector<8x1x128xf32>
    %35 = vector.shape_cast %34 : vector<8x1x128xf32> to vector<8x128xf32>
    %36 = arith.subf %33, %35 : vector<8x128xf32>
    %37 = math.absf %36 : vector<8x128xf32>
    %cst_21 = arith.constant 1.000000e+00 : f32
    %38 = vector.broadcast %cst_21 : f32 to vector<8x128xf32>
    %39 = arith.cmpf olt, %37, %38 : vector<8x128xf32>
    %cst_22 = arith.constant 5.000000e-01 : f32
    %40 = vector.broadcast %cst_22 : f32 to vector<8x128xf32>
    %41 = arith.mulf %40, %36 : vector<8x128xf32>
    %42 = arith.mulf %41, %36 : vector<8x128xf32>
    %cst_23 = arith.constant 5.000000e-01 : f32
    %43 = vector.broadcast %cst_23 : f32 to vector<8x128xf32>
    %44 = arith.subf %37, %43 : vector<8x128xf32>
    %45 = arith.select %39, %42, %44 : vector<8x128xi1>, vector<8x128xf32>
    %46 = arith.addf %31, %45 : vector<8x128xf32>
    %c0_24 = arith.constant 0 : index
    %c2 = arith.constant 2 : index
    %c0_25 = arith.constant 0 : index
    %47 = vector.load %arg1[%c0_24, %c2, %c0_25] : memref<8x4x128xf32, #tpu.memory_space<vmem>>, vector<8x1x128xf32>
    %48 = vector.shape_cast %47 : vector<8x1x128xf32> to vector<8x128xf32>
    %c0_26 = arith.constant 0 : index
    %c2_27 = arith.constant 2 : index
    %c0_28 = arith.constant 0 : index
    %49 = vector.load %arg2[%c0_26, %c2_27, %c0_28] : memref<8x4x128xf32, #tpu.memory_space<vmem>>, vector<8x1x128xf32>
    %50 = vector.shape_cast %49 : vector<8x1x128xf32> to vector<8x128xf32>
    %51 = arith.subf %48, %50 : vector<8x128xf32>
    %52 = math.absf %51 : vector<8x128xf32>
    %cst_29 = arith.constant 1.000000e+00 : f32
    %53 = vector.broadcast %cst_29 : f32 to vector<8x128xf32>
    %54 = arith.cmpf olt, %52, %53 : vector<8x128xf32>
    %cst_30 = arith.constant 5.000000e-01 : f32
    %55 = vector.broadcast %cst_30 : f32 to vector<8x128xf32>
    %56 = arith.mulf %55, %51 : vector<8x128xf32>
    %57 = arith.mulf %56, %51 : vector<8x128xf32>
    %cst_31 = arith.constant 5.000000e-01 : f32
    %58 = vector.broadcast %cst_31 : f32 to vector<8x128xf32>
    %59 = arith.subf %52, %58 : vector<8x128xf32>
    %60 = arith.select %54, %57, %59 : vector<8x128xi1>, vector<8x128xf32>
    %61 = arith.addf %46, %60 : vector<8x128xf32>
    %c0_32 = arith.constant 0 : index
    %c3 = arith.constant 3 : index
    %c0_33 = arith.constant 0 : index
    %62 = vector.load %arg1[%c0_32, %c3, %c0_33] : memref<8x4x128xf32, #tpu.memory_space<vmem>>, vector<8x1x128xf32>
    %63 = vector.shape_cast %62 : vector<8x1x128xf32> to vector<8x128xf32>
    %c0_34 = arith.constant 0 : index
    %c3_35 = arith.constant 3 : index
    %c0_36 = arith.constant 0 : index
    %64 = vector.load %arg2[%c0_34, %c3_35, %c0_36] : memref<8x4x128xf32, #tpu.memory_space<vmem>>, vector<8x1x128xf32>
    %65 = vector.shape_cast %64 : vector<8x1x128xf32> to vector<8x128xf32>
    %66 = arith.subf %63, %65 : vector<8x128xf32>
    %67 = math.absf %66 : vector<8x128xf32>
    %cst_37 = arith.constant 1.000000e+00 : f32
    %68 = vector.broadcast %cst_37 : f32 to vector<8x128xf32>
    %69 = arith.cmpf olt, %67, %68 : vector<8x128xf32>
    %cst_38 = arith.constant 5.000000e-01 : f32
    %70 = vector.broadcast %cst_38 : f32 to vector<8x128xf32>
    %71 = arith.mulf %70, %66 : vector<8x128xf32>
    %72 = arith.mulf %71, %66 : vector<8x128xf32>
    %cst_39 = arith.constant 5.000000e-01 : f32
    %73 = vector.broadcast %cst_39 : f32 to vector<8x128xf32>
    %74 = arith.subf %67, %73 : vector<8x128xf32>
    %75 = arith.select %69, %72, %74 : vector<8x128xi1>, vector<8x128xf32>
    %76 = arith.addf %61, %75 : vector<8x128xf32>
    %cst_40 = arith.constant 0.000000e+00 : f32
    %77 = vector.broadcast %cst_40 : f32 to vector<8x128xf32>
    %78 = arith.select %12, %76, %77 : vector<8x128xi1>, vector<8x128xf32>
    %cst_41 = arith.constant 5.000000e-01 : f32
    %79 = vector.broadcast %cst_41 : f32 to vector<8x128xf32>
    %80 = arith.subf %1, %79 : vector<8x128xf32>
    %cst_42 = arith.constant 0.000000e+00 : f32
    %81 = vector.broadcast %cst_42 : f32 to vector<8x128xf32>
    %82 = arith.maximumf %80, %81 : vector<8x128xf32>
    %cst_43 = arith.constant 5.000000e-01 : f32
    %83 = vector.broadcast %cst_43 : f32 to vector<8x128xf32>
    %84 = arith.mulf %82, %83 : vector<8x128xf32>
    %cst_44 = arith.constant 0.000000e+00 : f32
    %85 = vector.broadcast %cst_44 : f32 to vector<8x128xf32>
    %86 = arith.select %15, %84, %85 : vector<8x128xi1>, vector<8x128xf32>
    %cst_45 = arith.constant 6.000000e-01 : f32
    %87 = vector.broadcast %cst_45 : f32 to vector<8x128xf32>
    %88 = arith.subf %87, %1 : vector<8x128xf32>
    %cst_46 = arith.constant 0.000000e+00 : f32
    %89 = vector.broadcast %cst_46 : f32 to vector<8x128xf32>
    %90 = arith.maximumf %88, %89 : vector<8x128xf32>
    %cst_47 = arith.constant 5.000000e-01 : f32
    %91 = vector.broadcast %cst_47 : f32 to vector<8x128xf32>
    %92 = arith.mulf %90, %91 : vector<8x128xf32>
    %cst_48 = arith.constant 0.000000e+00 : f32
    %93 = vector.broadcast %cst_48 : f32 to vector<8x128xf32>
    %94 = arith.select %12, %92, %93 : vector<8x128xi1>, vector<8x128xf32>
    %95 = arith.mulf %86, %86 : vector<8x128xf32>
    %96 = arith.mulf %94, %94 : vector<8x128xf32>
    %97 = arith.addf %95, %96 : vector<8x128xf32>
    %98 = arith.truncf %97 : vector<8x128xf32> to vector<8x128xbf16>
    %c0_49 = arith.constant 0 : index
    %c0_50 = arith.constant 0 : index
    %99 = vector.load %arg5[%c0_49, %c0_50] : memref<8x128xbf16, #tpu.memory_space<vmem>>, vector<8x128xbf16>
    tpu.vector_store %arg5[%c0_49, %c0_50], %98 {strides = array<i32>} : memref<8x128xbf16, #tpu.memory_space<vmem>>, vector<8x128xbf16>,
    %cst_51 = arith.constant -1.000000e+00 : f32
    %100 = vector.broadcast %cst_51 : f32 to vector<8x128xf32>
    %101 = arith.select %15, %97, %100 : vector<8x128xi1>, vector<8x128xf32>
    %c0_52 = arith.constant 0 : index
    %c0_53 = arith.constant 0 : index
    %102 = vector.load %arg6[%c0_52, %c0_53] : memref<8x128xf32, #tpu.memory_space<vmem>>, vector<8x128xf32>
    tpu.vector_store %arg6[%c0_52, %c0_53], %101 {strides = array<i32>} : memref<8x128xf32, #tpu.memory_space<vmem>>, vector<8x128xf32>,
    %103 = arith.extui %12 : vector<8x128xi1> to vector<8x128xi32>
    %104 = arith.sitofp %103 : vector<8x128xi32> to vector<8x128xf32>
    %105 = vector.shape_cast %104 : vector<8x128xf32> to vector<1x8x128xf32>
    %cst_54 = arith.constant dense<0.000000e+00> : vector<1xf32>
    %106 = vector.multi_reduction <add>, %105, %cst_54 [1, 2] : vector<1x8x128xf32> to vector<1xf32>
    %107 = vector.shape_cast %106 : vector<1xf32> to vector<1x1x1xf32>
    %108 = vector.extract %107[0, 0, 0] : f32 from vector<1x1x1xf32>
    %109 = vector.shape_cast %78 : vector<8x128xf32> to vector<1x8x128xf32>
    %cst_55 = arith.constant dense<0.000000e+00> : vector<1xf32>
    %110 = vector.multi_reduction <add>, %109, %cst_55 [1, 2] : vector<1x8x128xf32> to vector<1xf32>
    %111 = vector.shape_cast %110 : vector<1xf32> to vector<1x1x1xf32>
    %112 = vector.extract %111[0, 0, 0] : f32 from vector<1x1x1xf32>
    %113 = vector.shape_cast %96 : vector<8x128xf32> to vector<1x8x128xf32>
    %cst_56 = arith.constant dense<0.000000e+00> : vector<1xf32>
    %114 = vector.multi_reduction <add>, %113, %cst_56 [1, 2] : vector<1x8x128xf32> to vector<1xf32>
    %115 = vector.shape_cast %114 : vector<1xf32> to vector<1x1x1xf32>
    %116 = vector.extract %115[0, 0, 0] : f32 from vector<1x1x1xf32>
    %117 = tpu.iota {dimensions = array<i32: 2>} : vector<1x8x128xi32>
    %c0_i32 = arith.constant 0 : i32
    %118 = vector.broadcast %c0_i32 : i32 to vector<1x8x128xi32>
    %119 = arith.cmpi eq, %117, %118 : vector<1x8x128xi32>
    %120 = arith.extui %119 : vector<1x8x128xi1> to vector<1x8x128xi32>
    %121 = arith.sitofp %120 : vector<1x8x128xi32> to vector<1x8x128xf32>
    %122 = vector.broadcast %108 : f32 to vector<1x8x128xf32>
    %123 = arith.mulf %121, %122 : vector<1x8x128xf32>
    %c1_i32 = arith.constant 1 : i32
    %124 = vector.broadcast %c1_i32 : i32 to vector<1x8x128xi32>
    %125 = arith.cmpi eq, %117, %124 : vector<1x8x128xi32>
    %126 = arith.extui %125 : vector<1x8x128xi1> to vector<1x8x128xi32>
    %127 = arith.sitofp %126 : vector<1x8x128xi32> to vector<1x8x128xf32>
    %128 = vector.broadcast %112 : f32 to vector<1x8x128xf32>
    %129 = arith.mulf %127, %128 : vector<1x8x128xf32>
    %130 = arith.addf %123, %129 : vector<1x8x128xf32>
    %c2_i32 = arith.constant 2 : i32
    %131 = vector.broadcast %c2_i32 : i32 to vector<1x8x128xi32>
    %132 = arith.cmpi eq, %117, %131 : vector<1x8x128xi32>
    %133 = arith.extui %132 : vector<1x8x128xi1> to vector<1x8x128xi32>
    %134 = arith.sitofp %133 : vector<1x8x128xi32> to vector<1x8x128xf32>
    %135 = vector.broadcast %116 : f32 to vector<1x8x128xf32>
    %136 = arith.mulf %134, %135 : vector<1x8x128xf32>
    %137 = arith.addf %130, %136 : vector<1x8x128xf32>
    %c0_57 = arith.constant 0 : index
    %c0_58 = arith.constant 0 : index
    %c0_59 = arith.constant 0 : index
    %138 = vector.load %arg7[%c0_57, %c0_58, %c0_59] : memref<1x8x128xf32, #tpu.memory_space<vmem>>, vector<1x8x128xf32>
    tpu.vector_store %arg7[%c0_57, %c0_58, %c0_59], %137 {strides = array<i32>} : memref<1x8x128xf32, #tpu.memory_space<vmem>>, vector<1x8x128xf32>,
    return
  }
  func.func @transform_0(%arg0: i32) -> (i32, i32, i32) {
    %c0_i32 = arith.constant 0 : i32
    %c0_i32_0 = arith.constant 0 : i32
    %c0_i32_1 = arith.constant 0 : i32
    return %arg0, %c0_i32, %c0_i32_0 : i32, i32, i32
  }
  func.func @transform_1(%arg0: i32) -> (i32, i32, i32) {
    %c0_i32 = arith.constant 0 : i32
    %c0_i32_0 = arith.constant 0 : i32
    %c0_i32_1 = arith.constant 0 : i32
    return %arg0, %c0_i32, %c0_i32_0 : i32, i32, i32
  }
  func.func @transform_2(%arg0: i32) -> (i32, i32) {
    %c0_i32 = arith.constant 0 : i32
    %c0_i32_0 = arith.constant 0 : i32
    return %arg0, %c0_i32 : i32, i32
  }
  func.func @transform_3(%arg0: i32) -> (i32, i32) {
    %c0_i32 = arith.constant 0 : i32
    %c0_i32_0 = arith.constant 0 : i32
    return %arg0, %c0_i32 : i32, i32
  }
  func.func @transform_4(%arg0: i32) -> (i32, i32) {
    %c0_i32 = arith.constant 0 : i32
    %c0_i32_0 = arith.constant 0 : i32
    return %arg0, %c0_i32 : i32, i32
  }
  func.func @transform_5(%arg0: i32) -> (i32, i32) {
    %c0_i32 = arith.constant 0 : i32
    %c0_i32_0 = arith.constant 0 : i32
    return %arg0, %c0_i32 : i32, i32
  }
  func.func @transform_6(%arg0: i32) -> (i32, i32, i32) {
    %c0_i32 = arith.constant 0 : i32
    %c0_i32_0 = arith.constant 0 : i32
    %c0_i32_1 = arith.constant 0 : i32
    return %arg0, %c0_i32, %c0_i32_0 : i32, i32, i32
  }
}

</mosaic_0001>

<llo_original>
// kernel: tpu_custom_call.1
$region0: #{tpu_custom_call.1}
  #allocation0 [shape = 'u32[]', space=smem, size = 0x4, offset = 0x4, fixed_abs, tag = 'smem constant byte address 0x4 - core index']
  #allocation1 [shape = 'u32[144,128]{1,0:T(1,128)}', space=vmem, size = 0x12000, scoped, tag = 'internal scratch']
  %s0 = inlined_call_operand.hbm [shape: f32[8,4,128], index: 0, kind: input, shape index: {}]
  %s1 = inlined_call_operand.hbm [shape: f32[8,4,128], index: 1, kind: input, shape index: {}]
  %s2 = inlined_call_operand.hbm [shape: f32[8,128], index: 2, kind: input, shape index: {}]
  %s3 = inlined_call_operand.vmem [shape: f32[8,128], index: 3, kind: input, shape index: {}]
  %s4 = inlined_call_operand.hbm [shape: bf16[8,128], index: 4, kind: output, shape index: {0}]
  %s5 = inlined_call_operand.hbm [shape: f32[8,128], index: 5, kind: output, shape index: {1}]
  %s6 = inlined_call_operand.hbm [shape: f32[1,8,128], index: 6, kind: output, shape index: {2}]
  %7 = xla_tuple %s4, %s5, %s6
  %s8 = sld [smem:[#allocation0]]
  $region54: #{tpu_custom_call.1} parent=0
    _
  %s10 = ssub.s32 1, %s8
  %s11 = scalar_select 0, %s10, %s8
  $region1: #{tpu_custom_call.1} parent=0
    #allocation2 [shape = 'u8[16384]{0}', space=vmem, size = 0x4000, scoped, tag = 'input window, operand 0, single buffered']
    #allocation3 [shape = 's32[1]{0}', space=sflag, size = 0x4, scoped, tag = 'scoped memory for tpu_custom_call.1']
    #allocation4 [shape = 's32[1]{0}', space=sflag, size = 0x4, scoped, tag = 'scoped memory for tpu_custom_call.1']
    #allocation5 [shape = 'u8[16384]{0}', space=vmem, size = 0x4000, scoped, tag = 'input window, operand 1, single buffered']
    #allocation6 [shape = 's32[1]{0}', space=sflag, size = 0x4, scoped, tag = 'scoped memory for tpu_custom_call.1']
    #allocation7 [shape = 'u8[4096]{0}', space=vmem, size = 0x1000, scoped, tag = 'input window, operand 2, single buffered']
    #allocation8 [shape = 'u8[2048]{0}', space=vmem, size = 0x800, scoped, tag = 'output window, operand 0, single buffered']
    #allocation9 [shape = 'u8[4096]{0}', space=vmem, size = 0x1000, scoped, tag = 'output window, operand 1, single buffered']
    #allocation10 [shape = 's32[1]{0}', space=sflag, size = 0x4, scoped, tag = 'scoped memory for tpu_custom_call.1']
    #allocation11 [shape = 'u8[4096]{0}', space=vmem, size = 0x1000, scoped, tag = 'output window, operand 2, single buffered']
    %12 = vsyncpa [#allocation3], 0
    %13 = vsyncpa [#allocation6], 0
    %14 = vsyncpa [#allocation4], 0
    %15 = vsyncpa [#allocation10], 0
    // Predicated region
    $region2: #{tpu_custom_call.1} parent=1 // pred_check
      _
    $region3: #{tpu_custom_call.1} parent=1 // pred_check_branch
      %17 = sbr.rel (0) target = $region5
    $region4: #{tpu_custom_call.1} parent=1 // pred_region
      %s19 = ssub.s32 512, 512
      %20 = vsyncadd [#allocation3], %s19
      %s21 = sshll.u32 [#allocation2], 4
      %s22 = int_to_ptr.vmem [resolvable:$true] %s21
      %27 = dma.hbm_to_vmem [thread:$0]  %s0, 512, %s22, [#allocation3], 64, 64, 4
    $region5: #{tpu_custom_call.1} parent=1 // pred_fallthru
      _
    // Predicated region
    $region6: #{tpu_custom_call.1} parent=1 // pred_check
      _
    $region7: #{tpu_custom_call.1} parent=1 // pred_check_branch
      %29 = sbr.rel (0) target = $region9
    $region8: #{tpu_custom_call.1} parent=1 // pred_region
      %s31 = ssub.s32 512, 512
      %32 = vsyncadd [#allocation6], %s31
      %s33 = sshll.u32 [#allocation5], 4
      %s34 = int_to_ptr.vmem [resolvable:$true] %s33
      %39 = dma.hbm_to_vmem [thread:$0]  %s1, 512, %s34, [#allocation6], 64, 64, 4
    $region9: #{tpu_custom_call.1} parent=1 // pred_fallthru
      _
    // Predicated region
    $region10: #{tpu_custom_call.1} parent=1 // pred_check
      _
    $region11: #{tpu_custom_call.1} parent=1 // pred_check_branch
      %41 = sbr.rel (0) target = $region13
    $region12: #{tpu_custom_call.1} parent=1 // pred_region
      %s43 = ssub.s32 128, 128
      %44 = vsyncadd [#allocation6], %s43
      %s46 = sshll.u32 [#allocation7], 4
      %s47 = int_to_ptr.vmem [resolvable:$true] %s46
      %49 = dma.hbm_to_vmem [thread:$0]  %s2, 128, %s47, [#allocation6]
    $region13: #{tpu_custom_call.1} parent=1 // pred_fallthru
      _
    // Predicated region
    $region14: #{tpu_custom_call.1} parent=1 // pred_check
      _
    $region15: #{tpu_custom_call.1} parent=1 // pred_check_branch
      %51 = sbr.rel (0) target = $region17
    $region16: #{tpu_custom_call.1} parent=1 // pred_region
      _
    $region17: #{tpu_custom_call.1} parent=1 // pred_fallthru
      _
    // Predicated region
    $region18: #{tpu_custom_call.1} parent=1 // pred_check
      _
    $region19: #{tpu_custom_call.1} parent=1 // pred_check_branch
      %53 = sbr.rel (0) target = $region21
    $region20: #{tpu_custom_call.1} parent=1 // pred_region
      %54 = dma.done [#allocation3], 512
    $region21: #{tpu_custom_call.1} parent=1 // pred_fallthru
      _
    // Predicated region
    $region22: #{tpu_custom_call.1} parent=1 // pred_check
      _
    $region23: #{tpu_custom_call.1} parent=1 // pred_check_branch
      %56 = sbr.rel (0) target = $region25
    $region24: #{tpu_custom_call.1} parent=1 // pred_region
      %57 = dma.done [#allocation6], 512
    $region25: #{tpu_custom_call.1} parent=1 // pred_fallthru
      _
    // Predicated region
    $region26: #{tpu_custom_call.1} parent=1 // pred_check
      _
    $region27: #{tpu_custom_call.1} parent=1 // pred_check_branch
      %59 = sbr.rel (0) target = $region29
    $region28: #{tpu_custom_call.1} parent=1 // pred_region
      %60 = dma.done [#allocation6], 128
    $region29: #{tpu_custom_call.1} parent=1 // pred_fallthru
      _
    %v61 = vld [vmem:[%s3] sm:$0xff]
    %v62 = vld [vmem:[#allocation7] sm:$0xff]
    %v63 = vlaneseq
    %v64 = vshrl.u32 %v63, 7
    %s65 = smul.u32 0, 8
    %v66 = vstv %s65
    %v67 = vadd.s32 %v66, %v64
    %vm68 = vcmp.lt.s32.totalorder %v67, 8
    %vm69 = vcmp.gt.f32.partialorder %v61, 0.0
    %vm70 = vcmp.eq.f32.partialorder %v61, -1.0
    %vm71 = vmand %vm68, %vm69
    %vm72 = vmor %vm69, %vm70
    %vm73 = vmxor %vm72, 1
    %vm74 = vmand %vm68, %vm73
    %v75 = vld [vmem:[#allocation2] sm:$0x1]
    %v76 = vld [vmem:[#allocation2 + $0x4] sm:$0x1]
    %v77 = vld [vmem:[#allocation2 + $0x8] sm:$0x1]
    %v78 = vld [vmem:[#allocation2 + $0xc] sm:$0x1]
    %v79 = vld [vmem:[#allocation2 + $0x10] sm:$0x1]
    %v80 = vld [vmem:[#allocation2 + $0x14] sm:$0x1]
    %v81 = vld [vmem:[#allocation2 + $0x18] sm:$0x1]
    %v82 = vld [vmem:[#allocation2 + $0x1c] sm:$0x1]
    %v83 = vld [vmem:[#allocation5] sm:$0x1]
    %v84 = vld [vmem:[#allocation5 + $0x4] sm:$0x1]
    %v85 = vld [vmem:[#allocation5 + $0x8] sm:$0x1]
    %v86 = vld [vmem:[#allocation5 + $0xc] sm:$0x1]
    %v87 = vld [vmem:[#allocation5 + $0x10] sm:$0x1]
    %v88 = vld [vmem:[#allocation5 + $0x14] sm:$0x1]
    %v89 = vld [vmem:[#allocation5 + $0x18] sm:$0x1]
    %v90 = vld [vmem:[#allocation5 + $0x1c] sm:$0x1]
    %v91 = vsub.f32 %v75, %v83
    %v92 = vsub.f32 %v76, %v84
    %v93 = vsub.f32 %v77, %v85
    %v94 = vsub.f32 %v78, %v86
    %v95 = vsub.f32 %v79, %v87
    %v96 = vsub.f32 %v80, %v88
    %v97 = vsub.f32 %v81, %v89
    %v98 = vsub.f32 %v82, %v90
    %v99 = vand.u32 2147483647, %v91
    %v100 = vand.u32 2147483647, %v92
    %v101 = vand.u32 2147483647, %v93
    %v102 = vand.u32 2147483647, %v94
    %v103 = vand.u32 2147483647, %v95
    %v104 = vand.u32 2147483647, %v96
    %v105 = vand.u32 2147483647, %v97
    %v106 = vand.u32 2147483647, %v98
    %vm107 = vcmp.lt.f32.partialorder %v99, 1.0
    %vm108 = vcmp.lt.f32.partialorder %v100, 1.0
    %vm109 = vcmp.lt.f32.partialorder %v101, 1.0
    %vm110 = vcmp.lt.f32.partialorder %v102, 1.0
    %vm111 = vcmp.lt.f32.partialorder %v103, 1.0
    %vm112 = vcmp.lt.f32.partialorder %v104, 1.0
    %vm113 = vcmp.lt.f32.partialorder %v105, 1.0
    %vm114 = vcmp.lt.f32.partialorder %v106, 1.0
    %v115 = vmul.f32 %v91, 0.5
    %v116 = vmul.f32 %v92, 0.5
    %v117 = vmul.f32 %v93, 0.5
    %v118 = vmul.f32 %v94, 0.5
    %v119 = vmul.f32 %v95, 0.5
    %v120 = vmul.f32 %v96, 0.5
    %v121 = vmul.f32 %v97, 0.5
    %v122 = vmul.f32 %v98, 0.5
    %v123 = vmul.f32 %v115, %v91
    %v124 = vmul.f32 %v116, %v92
    %v125 = vmul.f32 %v117, %v93
    %v126 = vmul.f32 %v118, %v94
    %v127 = vmul.f32 %v119, %v95
    %v128 = vmul.f32 %v120, %v96
    %v129 = vmul.f32 %v121, %v97
    %v130 = vmul.f32 %v122, %v98
    %v131 = vsub.f32 %v99, 0.5
    %v132 = vsub.f32 %v100, 0.5
    %v133 = vsub.f32 %v101, 0.5
    %v134 = vsub.f32 %v102, 0.5
    %v135 = vsub.f32 %v103, 0.5
    %v136 = vsub.f32 %v104, 0.5
    %v137 = vsub.f32 %v105, 0.5
    %v138 = vsub.f32 %v106, 0.5
    %v139 = vsel %vm107, %v123, %v131
    %v140 = vsel %vm108, %v124, %v132
    %v141 = vsel %vm109, %v125, %v133
    %v142 = vsel %vm110, %v126, %v134
    %v143 = vsel %vm111, %v127, %v135
    %v144 = vsel %vm112, %v128, %v136
    %v145 = vsel %vm113, %v129, %v137
    %v146 = vsel %vm114, %v130, %v138
    %v147 = vadd.f32 %v139, 0.0
    %v148 = vadd.f32 %v140, 0.0
    %v149 = vadd.f32 %v141, 0.0
    %v150 = vadd.f32 %v142, 0.0
    %v151 = vadd.f32 %v143, 0.0
    %v152 = vadd.f32 %v144, 0.0
    %v153 = vadd.f32 %v145, 0.0
    %v154 = vadd.f32 %v146, 0.0
    %v155 = vld [vmem:[#allocation2 + $0x1] sm:$0x1]
    %v156 = vld [vmem:[#allocation2 + $0x5] sm:$0x1]
    %v157 = vld [vmem:[#allocation2 + $0x9] sm:$0x1]
    %v158 = vld [vmem:[#allocation2 + $0xd] sm:$0x1]
    %v159 = vld [vmem:[#allocation2 + $0x11] sm:$0x1]
    %v160 = vld [vmem:[#allocation2 + $0x15] sm:$0x1]
    %v161 = vld [vmem:[#allocation2 + $0x19] sm:$0x1]
    %v162 = vld [vmem:[#allocation2 + $0x1d] sm:$0x1]
    %v163 = vld [vmem:[#allocation5 + $0x1] sm:$0x1]
    %v164 = vld [vmem:[#allocation5 + $0x5] sm:$0x1]
    %v165 = vld [vmem:[#allocation5 + $0x9] sm:$0x1]
    %v166 = vld [vmem:[#allocation5 + $0xd] sm:$0x1]
    %v167 = vld [vmem:[#allocation5 + $0x11] sm:$0x1]
    %v168 = vld [vmem:[#allocation5 + $0x15] sm:$0x1]
    %v169 = vld [vmem:[#allocation5 + $0x19] sm:$0x1]
    %v170 = vld [vmem:[#allocation5 + $0x1d] sm:$0x1]
    %v171 = vsub.f32 %v155, %v163
    %v172 = vsub.f32 %v156, %v164
    %v173 = vsub.f32 %v157, %v165
    %v174 = vsub.f32 %v158, %v166
    %v175 = vsub.f32 %v159, %v167
    %v176 = vsub.f32 %v160, %v168
    %v177 = vsub.f32 %v161, %v169
    %v178 = vsub.f32 %v162, %v170
    %v179 = vand.u32 2147483647, %v171
    %v180 = vand.u32 2147483647, %v172
    %v181 = vand.u32 2147483647, %v173
    %v182 = vand.u32 2147483647, %v174
    %v183 = vand.u32 2147483647, %v175
    %v184 = vand.u32 2147483647, %v176
    %v185 = vand.u32 2147483647, %v177
    %v186 = vand.u32 2147483647, %v178
    %vm187 = vcmp.lt.f32.partialorder %v179, 1.0
    %vm188 = vcmp.lt.f32.partialorder %v180, 1.0
    %vm189 = vcmp.lt.f32.partialorder %v181, 1.0
    %vm190 = vcmp.lt.f32.partialorder %v182, 1.0
    %vm191 = vcmp.lt.f32.partialorder %v183, 1.0
    %vm192 = vcmp.lt.f32.partialorder %v184, 1.0
    %vm193 = vcmp.lt.f32.partialorder %v185, 1.0
    %vm194 = vcmp.lt.f32.partialorder %v186, 1.0
    %v195 = vmul.f32 %v171, 0.5
    %v196 = vmul.f32 %v172, 0.5
    %v197 = vmul.f32 %v173, 0.5
    %v198 = vmul.f32 %v174, 0.5
    %v199 = vmul.f32 %v175, 0.5
    %v200 = vmul.f32 %v176, 0.5
    %v201 = vmul.f32 %v177, 0.5
    %v202 = vmul.f32 %v178, 0.5
    %v203 = vmul.f32 %v195, %v171
    %v204 = vmul.f32 %v196, %v172
    %v205 = vmul.f32 %v197, %v173
    %v206 = vmul.f32 %v198, %v174
    %v207 = vmul.f32 %v199, %v175
    %v208 = vmul.f32 %v200, %v176
    %v209 = vmul.f32 %v201, %v177
    %v210 = vmul.f32 %v202, %v178
    %v211 = vsub.f32 %v179, 0.5
    %v212 = vsub.f32 %v180, 0.5
    %v213 = vsub.f32 %v181, 0.5
    %v214 = vsub.f32 %v182, 0.5
    %v215 = vsub.f32 %v183, 0.5
    %v216 = vsub.f32 %v184, 0.5
    %v217 = vsub.f32 %v185, 0.5
    %v218 = vsub.f32 %v186, 0.5
    %v219 = vsel %vm187, %v203, %v211
    %v220 = vsel %vm188, %v204, %v212
    %v221 = vsel %vm189, %v205, %v213
    %v222 = vsel %vm190, %v206, %v214
    %v223 = vsel %vm191, %v207, %v215
    %v224 = vsel %vm192, %v208, %v216
    %v225 = vsel %vm193, %v209, %v217
    %v226 = vsel %vm194, %v210, %v218
    %v227 = vadd.f32 %v147, %v219
    %v228 = vadd.f32 %v148, %v220
    %v229 = vadd.f32 %v149, %v221
    %v230 = vadd.f32 %v150, %v222
    %v231 = vadd.f32 %v151, %v223
    %v232 = vadd.f32 %v152, %v224
    %v233 = vadd.f32 %v153, %v225
    %v234 = vadd.f32 %v154, %v226
    %v235 = vld [vmem:[#allocation2 + $0x2] sm:$0x1]
    %v236 = vld [vmem:[#allocation2 + $0x6] sm:$0x1]
    %v237 = vld [vmem:[#allocation2 + $0xa] sm:$0x1]
    %v238 = vld [vmem:[#allocation2 + $0xe] sm:$0x1]
    %v239 = vld [vmem:[#allocation2 + $0x12] sm:$0x1]
    %v240 = vld [vmem:[#allocation2 + $0x16] sm:$0x1]
    %v241 = vld [vmem:[#allocation2 + $0x1a] sm:$0x1]
    %v242 = vld [vmem:[#allocation2 + $0x1e] sm:$0x1]
    %v243 = vld [vmem:[#allocation5 + $0x2] sm:$0x1]
    %v244 = vld [vmem:[#allocation5 + $0x6] sm:$0x1]
    %v245 = vld [vmem:[#allocation5 + $0xa] sm:$0x1]
    %v246 = vld [vmem:[#allocation5 + $0xe] sm:$0x1]
    %v247 = vld [vmem:[#allocation5 + $0x12] sm:$0x1]
    %v248 = vld [vmem:[#allocation5 + $0x16] sm:$0x1]
    %v249 = vld [vmem:[#allocation5 + $0x1a] sm:$0x1]
    %v250 = vld [vmem:[#allocation5 + $0x1e] sm:$0x1]
    %v251 = vsub.f32 %v235, %v243
    %v252 = vsub.f32 %v236, %v244
    %v253 = vsub.f32 %v237, %v245
    %v254 = vsub.f32 %v238, %v246
    %v255 = vsub.f32 %v239, %v247
    %v256 = vsub.f32 %v240, %v248
    %v257 = vsub.f32 %v241, %v249
    %v258 = vsub.f32 %v242, %v250
    %v259 = vand.u32 2147483647, %v251
    %v260 = vand.u32 2147483647, %v252
    %v261 = vand.u32 2147483647, %v253
    %v262 = vand.u32 2147483647, %v254
    %v263 = vand.u32 2147483647, %v255
    %v264 = vand.u32 2147483647, %v256
    %v265 = vand.u32 2147483647, %v257
    %v266 = vand.u32 2147483647, %v258
    %vm267 = vcmp.lt.f32.partialorder %v259, 1.0
    %vm268 = vcmp.lt.f32.partialorder %v260, 1.0
    %vm269 = vcmp.lt.f32.partialorder %v261, 1.0
    %vm270 = vcmp.lt.f32.partialorder %v262, 1.0
    %vm271 = vcmp.lt.f32.partialorder %v263, 1.0
    %vm272 = vcmp.lt.f32.partialorder %v264, 1.0
    %vm273 = vcmp.lt.f32.partialorder %v265, 1.0
    %vm274 = vcmp.lt.f32.partialorder %v266, 1.0
    %v275 = vmul.f32 %v251, 0.5
    %v276 = vmul.f32 %v252, 0.5
    %v277 = vmul.f32 %v253, 0.5
    %v278 = vmul.f32 %v254, 0.5
    %v279 = vmul.f32 %v255, 0.5
    %v280 = vmul.f32 %v256, 0.5
    %v281 = vmul.f32 %v257, 0.5
    %v282 = vmul.f32 %v258, 0.5
    %v283 = vmul.f32 %v275, %v251
    %v284 = vmul.f32 %v276, %v252
    %v285 = vmul.f32 %v277, %v253
    %v286 = vmul.f32 %v278, %v254
    %v287 = vmul.f32 %v279, %v255
    %v288 = vmul.f32 %v280, %v256
    %v289 = vmul.f32 %v281, %v257
    %v290 = vmul.f32 %v282, %v258
    %v291 = vsub.f32 %v259, 0.5
    %v292 = vsub.f32 %v260, 0.5
    %v293 = vsub.f32 %v261, 0.5
    %v294 = vsub.f32 %v262, 0.5
    %v295 = vsub.f32 %v263, 0.5
    %v296 = vsub.f32 %v264, 0.5
    %v297 = vsub.f32 %v265, 0.5
    %v298 = vsub.f32 %v266, 0.5
    %v299 = vsel %vm267, %v283, %v291
    %v300 = vsel %vm268, %v284, %v292
    %v301 = vsel %vm269, %v285, %v293
    %v302 = vsel %vm270, %v286, %v294
    %v303 = vsel %vm271, %v287, %v295
    %v304 = vsel %vm272, %v288, %v296
    %v305 = vsel %vm273, %v289, %v297
    %v306 = vsel %vm274, %v290, %v298
    %v307 = vadd.f32 %v227, %v299
    %v308 = vadd.f32 %v228, %v300
    %v309 = vadd.f32 %v229, %v301
    %v310 = vadd.f32 %v230, %v302
    %v311 = vadd.f32 %v231, %v303
    %v312 = vadd.f32 %v232, %v304
    %v313 = vadd.f32 %v233, %v305
    %v314 = vadd.f32 %v234, %v306
    %v315 = vld [vmem:[#allocation2 + $0x3] sm:$0x1]
    %v316 = vld [vmem:[#allocation2 + $0x7] sm:$0x1]
    %v317 = vld [vmem:[#allocation2 + $0xb] sm:$0x1]
    %v318 = vld [vmem:[#allocation2 + $0xf] sm:$0x1]
    %v319 = vld [vmem:[#allocation2 + $0x13] sm:$0x1]
    %v320 = vld [vmem:[#allocation2 + $0x17] sm:$0x1]
    %v321 = vld [vmem:[#allocation2 + $0x1b] sm:$0x1]
    %v322 = vld [vmem:[#allocation2 + $0x1f] sm:$0x1]
    %v323 = vld [vmem:[#allocation5 + $0x3] sm:$0x1]
    %v324 = vld [vmem:[#allocation5 + $0x7] sm:$0x1]
    %v325 = vld [vmem:[#allocation5 + $0xb] sm:$0x1]
    %v326 = vld [vmem:[#allocation5 + $0xf] sm:$0x1]
    %v327 = vld [vmem:[#allocation5 + $0x13] sm:$0x1]
    %v328 = vld [vmem:[#allocation5 + $0x17] sm:$0x1]
    %v329 = vld [vmem:[#allocation5 + $0x1b] sm:$0x1]
    %v330 = vld [vmem:[#allocation5 + $0x1f] sm:$0x1]
    %v331 = vsub.f32 %v315, %v323
    %v332 = vsub.f32 %v316, %v324
    %v333 = vsub.f32 %v317, %v325
    %v334 = vsub.f32 %v318, %v326
    %v335 = vsub.f32 %v319, %v327
    %v336 = vsub.f32 %v320, %v328
    %v337 = vsub.f32 %v321, %v329
    %v338 = vsub.f32 %v322, %v330
    %v339 = vand.u32 2147483647, %v331
    %v340 = vand.u32 2147483647, %v332
    %v341 = vand.u32 2147483647, %v333
    %v342 = vand.u32 2147483647, %v334
    %v343 = vand.u32 2147483647, %v335
    %v344 = vand.u32 2147483647, %v336
    %v345 = vand.u32 2147483647, %v337
    %v346 = vand.u32 2147483647, %v338
    %vm347 = vcmp.lt.f32.partialorder %v339, 1.0
    %vm348 = vcmp.lt.f32.partialorder %v340, 1.0
    %vm349 = vcmp.lt.f32.partialorder %v341, 1.0
    %vm350 = vcmp.lt.f32.partialorder %v342, 1.0
    %vm351 = vcmp.lt.f32.partialorder %v343, 1.0
    %vm352 = vcmp.lt.f32.partialorder %v344, 1.0
    %vm353 = vcmp.lt.f32.partialorder %v345, 1.0
    %vm354 = vcmp.lt.f32.partialorder %v346, 1.0
    %v355 = vmul.f32 %v331, 0.5
    %v356 = vmul.f32 %v332, 0.5
    %v357 = vmul.f32 %v333, 0.5
    %v358 = vmul.f32 %v334, 0.5
    %v359 = vmul.f32 %v335, 0.5
    %v360 = vmul.f32 %v336, 0.5
    %v361 = vmul.f32 %v337, 0.5
    %v362 = vmul.f32 %v338, 0.5
    %v363 = vmul.f32 %v355, %v331
    %v364 = vmul.f32 %v356, %v332
    %v365 = vmul.f32 %v357, %v333
    %v366 = vmul.f32 %v358, %v334
    %v367 = vmul.f32 %v359, %v335
    %v368 = vmul.f32 %v360, %v336
    %v369 = vmul.f32 %v361, %v337
    %v370 = vmul.f32 %v362, %v338
    %v371 = vsub.f32 %v339, 0.5
    %v372 = vsub.f32 %v340, 0.5
    %v373 = vsub.f32 %v341, 0.5
    %v374 = vsub.f32 %v342, 0.5
    %v375 = vsub.f32 %v343, 0.5
    %v376 = vsub.f32 %v344, 0.5
    %v377 = vsub.f32 %v345, 0.5
    %v378 = vsub.f32 %v346, 0.5
    %v379 = vsel %vm347, %v363, %v371
    %v380 = vsel %vm348, %v364, %v372
    %v381 = vsel %vm349, %v365, %v373
    %v382 = vsel %vm350, %v366, %v374
    %v383 = vsel %vm351, %v367, %v375
    %v384 = vsel %vm352, %v368, %v376
    %v385 = vsel %vm353, %v369, %v377
    %v386 = vsel %vm354, %v370, %v378
    %v387 = vadd.f32 %v307, %v379
    %v388 = vadd.f32 %v308, %v380
    %v389 = vadd.f32 %v309, %v381
    %v390 = vadd.f32 %v310, %v382
    %v391 = vadd.f32 %v311, %v383
    %v392 = vadd.f32 %v312, %v384
    %v393 = vadd.f32 %v313, %v385
    %v394 = vadd.f32 %v314, %v386
    %v403 = vrot.slane %v388, 7
    %vm404 = vcmask 1041409
    %v405 = vsel %vm404, %v403, %v387
    %v406 = vrot.slane %v389, 6
    %vm407 = vcmask 1042434
    %v408 = vsel %vm407, %v406, %v405
    %v409 = vrot.slane %v390, 5
    %vm410 = vcmask 1043459
    %v411 = vsel %vm410, %v409, %v408
    %v412 = vrot.slane %v391, 4
    %vm413 = vcmask 1044484
    %v414 = vsel %vm413, %v412, %v411
    %v415 = vrot.slane %v392, 3
    %vm416 = vcmask 1045509
    %v417 = vsel %vm416, %v415, %v414
    %v418 = vrot.slane %v393, 2
    %vm419 = vcmask 1046534
    %v420 = vsel %vm419, %v418, %v417
    %v421 = vrot.slane %v394, 1
    %vm422 = vcmask 1047559
    %v423 = vsel %vm422, %v421, %v420
    %v425 = vsel %vm71, %v423, 0.0
    %v426 = vsub.f32 %v62, 0.5
    %v427 = vmax.f32 %v426, 0.0
    %v428 = vmul.f32 %v427, 0.5
    %v429 = vsel %vm74, %v428, 0.0
    %v430 = vsub.f32 0.6, %v62
    %v431 = vmax.f32 %v430, 0.0
    %v432 = vmul.f32 %v431, 0.5
    %v433 = vsel %vm71, %v432, 0.0
    %v434 = vmul.f32 %v429, %v429
    %v435 = vmul.f32 %v433, %v433
    %v436 = vadd.f32 %v434, %v435
    %v437 = vpack.c.bf16 %v436, %v436
    %438 = vst [vmem:[#allocation8] sm:$0xf] %v437
    %v439 = vsel %vm74, %v436, -1.0
    %440 = vst [vmem:[#allocation9] sm:$0xff] %v439
    %v441 = vsel %vm71, 1, 0
    %v442 = vcvt.s32.f32 %v441
    %443 = vadd.xlane.f32.xlu0 %v442
    %v444 = vpop.xlane.xlu0 %443
    %v445 = vrot.slane %v444, 4
    %v446 = vadd.f32 %v444, %v445
    %v447 = vrot.slane %v446, 2
    %v448 = vadd.f32 %v446, %v447
    %v449 = vrot.slane %v448, 1
    %v450 = vadd.f32 %v448, %v449
    %s451 = vtos %v450
    %452 = vadd.xlane.f32.xlu0 %v425
    %v453 = vpop.xlane.xlu0 %452
    %v454 = vrot.slane %v453, 4
    %v455 = vadd.f32 %v453, %v454
    %v456 = vrot.slane %v455, 2
    %v457 = vadd.f32 %v455, %v456
    %v458 = vrot.slane %v457, 1
    %v459 = vadd.f32 %v457, %v458
    %s460 = vtos %v459
    %461 = vadd.xlane.f32.xlu0 %v435
    %v462 = vpop.xlane.xlu0 %461
    %v463 = vrot.slane %v462, 4
    %v464 = vadd.f32 %v462, %v463
    %v465 = vrot.slane %v464, 2
    %v466 = vadd.f32 %v464, %v465
    %v467 = vrot.slane %v466, 1
    %v468 = vadd.f32 %v466, %v467
    %s469 = vtos %v468
    %v470 = vlaneseq
    %v471 = vand.u32 %v470, 127
    %vm472 = vcmp.eq.s32.totalorder %v471, 0
    %v473 = vsel %vm472, 1, 0
    %v474 = vcvt.s32.f32 %v473
    %v475 = vstv %s451
    %v476 = vmul.f32 %v474, %v475
    %vm477 = vcmp.eq.s32.totalorder %v471, 1
    %v478 = vsel %vm477, 1, 0
    %v479 = vcvt.s32.f32 %v478
    %v480 = vstv %s460
    %v481 = vmul.f32 %v479, %v480
    %v482 = vadd.f32 %v476, %v481
    %vm483 = vcmp.eq.s32.totalorder %v471, 2
    %v484 = vsel %vm483, 1, 0
    %v485 = vcvt.s32.f32 %v484
    %v486 = vstv %s469
    %v487 = vmul.f32 %v485, %v486
    %v488 = vadd.f32 %v482, %v487
    %489 = vst [vmem:[#allocation11] sm:$0xff] %v488
    // Predicated region
    $region30: #{tpu_custom_call.1} parent=1 // pred_check
      _
    $region31: #{tpu_custom_call.1} parent=1 // pred_check_branch
      %491 = sbr.rel (0) target = $region33
    $region32: #{tpu_custom_call.1} parent=1 // pred_region
      %s493 = ssub.s32 64, 64
      %494 = vsyncadd [#allocation4], %s493
      %s496 = sshll.u32 [#allocation8], 4
      %s497 = int_to_ptr.vmem [resolvable:$true] %s496
      %499 = dma.vmem_to_hbm [thread:$0]  %s497, 64, %s4, [#allocation4]
    $region33: #{tpu_custom_call.1} parent=1 // pred_fallthru
      _
    // Predicated region
    $region34: #{tpu_custom_call.1} parent=1 // pred_check
      _
    $region35: #{tpu_custom_call.1} parent=1 // pred_check_branch
      %501 = sbr.rel (0) target = $region37
    $region36: #{tpu_custom_call.1} parent=1 // pred_region
      %s503 = ssub.s32 128, 128
      %504 = vsyncadd [#allocation10], %s503
      %s506 = sshll.u32 [#allocation9], 4
      %s507 = int_to_ptr.vmem [resolvable:$true] %s506
      %509 = dma.vmem_to_hbm [thread:$0]  %s507, 128, %s5, [#allocation10]
    $region37: #{tpu_custom_call.1} parent=1 // pred_fallthru
      _
    // Predicated region
    $region38: #{tpu_custom_call.1} parent=1 // pred_check
      _
    $region39: #{tpu_custom_call.1} parent=1 // pred_check_branch
      %511 = sbr.rel (0) target = $region41
    $region40: #{tpu_custom_call.1} parent=1 // pred_region
      %s513 = ssub.s32 128, 128
      %514 = vsyncadd [#allocation10], %s513
      %s516 = sshll.u32 [#allocation11], 4
      %s517 = int_to_ptr.vmem [resolvable:$true] %s516
      %519 = dma.vmem_to_hbm [thread:$0]  %s517, 128, %s6, [#allocation10]
    $region41: #{tpu_custom_call.1} parent=1 // pred_fallthru
      _
    // Predicated region
    $region42: #{tpu_custom_call.1} parent=1 // pred_check
      _
    $region43: #{tpu_custom_call.1} parent=1 // pred_check_branch
      %521 = sbr.rel (0) target = $region45
    $region44: #{tpu_custom_call.1} parent=1 // pred_region
      %522 = dma.done [#allocation4], 64
    $region45: #{tpu_custom_call.1} parent=1 // pred_fallthru
      _
    // Predicated region
    $region46: #{tpu_custom_call.1} parent=1 // pred_check
      _
    $region47: #{tpu_custom_call.1} parent=1 // pred_check_branch
      %524 = sbr.rel (0) target = $region49
    $region48: #{tpu_custom_call.1} parent=1 // pred_region
      %525 = dma.done [#allocation10], 128
    $region49: #{tpu_custom_call.1} parent=1 // pred_fallthru
      _
    // Predicated region
    $region50: #{tpu_custom_call.1} parent=1 // pred_check
      _
    $region51: #{tpu_custom_call.1} parent=1 // pred_check_branch
      %527 = sbr.rel (0) target = $region53
    $region52: #{tpu_custom_call.1} parent=1 // pred_region
      %528 = dma.done [#allocation10], 128
    $region53: #{tpu_custom_call.1} parent=1 // pred_fallthru
      _
    %529 = vsyncpa [#allocation3], 1
    %530 = vsyncpa [#allocation6], 1
    %531 = vsyncpa [#allocation4], 1
    %532 = vsyncpa [#allocation10], 1

</llo_original>
